<compile_context>
chip_gen: v7x
topology: tpu7x:2x2x1
jax: 0.10.0
libtpu: 0.0.40
codegen_flags: <defaults>
</compile_context>

<pallas_src>
import functools

import jax
import jax.numpy as jnp
from jax.experimental import pallas as pl
from jax.experimental.pallas import tpu as pltpu

_LANE = 128
_VMEM_LIMIT = 32 * 1024 * 1024   # within scoped/physical limits on v5e/v6e/v7x


def _round_up(x, m):
    return (x + m - 1) // m * m


def _pad_to(a, shape, dtype=None):
    if dtype is not None and a.dtype != dtype:
        a = a.astype(dtype)
    pads = [(0, t - s) for s, t in zip(a.shape, shape)]
    return jnp.pad(a, pads)


# ---------------------------------------------------------------------------
# Kernel A: Xe = H^T @ X, reduction over node row-tiles.
#   h_ref : (TM, E_pad)   bf16  row tile of incidence matrix
#   x_ref : (TM, F_pad)   bf16  row tile of node features
#   xe_ref: (E_pad, F_pad) bf16 output (resident; written on last tile)
#   acc   : (E_pad, F_pad) f32  VMEM accumulator
def _edge_agg_kernel(h_ref, x_ref, xe_ref, acc_ref):
    @pl.when(pl.program_id(0) == 0)
    def _():
        acc_ref[...] = jnp.zeros_like(acc_ref)

    # H_tile^T @ X_tile without materializing H^T: contract the row-tile dim.
    acc_ref[...] += jax.lax.dot_general(
        h_ref[...], x_ref[...],
        dimension_numbers=(((0,), (0,)), ((), ())),
        preferred_element_type=jnp.float32)

    @pl.when(pl.program_id(0) == pl.num_programs(0) - 1)
    def _():
        xe_ref[...] = acc_ref[...].astype(xe_ref.dtype)


# ---------------------------------------------------------------------------
# Kernel B: per node row-tile
#   Xv  = H_tile @ Xe
#   Xi  = (1-alpha)*Xv + alpha*X0_tile
#   out = (1-beta)*Xi + beta*(relu(Xi@W1 + b1) @ W2 + b2)
def _node_mlp_kernel(beta_ref, h_ref, xe_ref, x0_ref,
                     w1_ref, b1_ref, w2_ref, b2_ref, o_ref, *, alpha):
    beta = beta_ref[0, 0]

    xv = jnp.dot(h_ref[...], xe_ref[...], preferred_element_type=jnp.float32)
    xi = (1.0 - alpha) * xv + alpha * x0_ref[...]

    h1 = jnp.dot(xi.astype(jnp.bfloat16), w1_ref[...],
                 preferred_element_type=jnp.float32) + b1_ref[...]
    h1 = jnp.maximum(h1, 0.0)
    mlp = jnp.dot(h1.astype(jnp.bfloat16), w2_ref[...],
                  preferred_element_type=jnp.float32) + b2_ref[...]

    o_ref[...] = ((1.0 - beta) * xi + beta * mlp).astype(o_ref.dtype)


def jumplink_conv(X, vertex, edges, X0, params, *, num_edges,
                  alpha=0.5, beta=1.0, row_tile=256):
    """Pallas implementation of JumpLinkConv.forward (aggr='add')."""
    N, F = X.shape
    W1, b1, W2, b2 = params
    b1 = jnp.reshape(b1, (1, -1))
    b2 = jnp.reshape(b2, (1, -1))
    Fh = W1.shape[1]
    assert W2.shape[1] == F, "residual requires out_features == in_features"

    # ---- padded, lane-dense layout ---------------------------------------
    F_pad = _round_up(F, _LANE)
    Fh_pad = _round_up(Fh, _LANE)
    E_pad = _round_up(num_edges, _LANE)
    # Row tile: multiple of 16 (bf16 sublane pack); 256 by default for the
    # v6e/v7x 256x256 MXU.
    # TODO(synk): halve row_tile on v7x for very wide E_pad/F_pad (64 MiB VMEM).
    tm = row_tile if N >= row_tile else _round_up(N, 16)
    n_tiles = pl.cdiv(N, tm)
    N_pad = n_tiles * tm

    # ---- index glue (plain JAX): counted incidence matrix, bf16 ----------
    # Incidence counts are small integers -> exact in bf16 (up to 256).
    H = jnp.zeros((N_pad, E_pad), jnp.float32).at[vertex, edges].add(1.0)
    H = H.astype(jnp.bfloat16)

    Xp = _pad_to(X, (N_pad, F_pad), jnp.bfloat16)
    X0p = _pad_to(X0, (N_pad, F_pad), jnp.float32)
    W1p = _pad_to(W1, (F_pad, Fh_pad), jnp.bfloat16)
    W2p = _pad_to(W2, (Fh_pad, F_pad), jnp.bfloat16)
    b1p = _pad_to(b1, (1, Fh_pad), jnp.float32)
    b2p = _pad_to(b2, (1, F_pad), jnp.float32)
    beta_arr = jnp.full((1, 1), beta, jnp.float32)

    # ---- kernel A: Xe = H^T @ X  (reduction over row tiles) --------------
    xe = pl.pallas_call(
        _edge_agg_kernel,
        out_shape=jax.ShapeDtypeStruct((E_pad, F_pad), jnp.bfloat16),
        grid_spec=pltpu.PrefetchScalarGridSpec(
            num_scalar_prefetch=0,
            grid=(n_tiles,),
            in_specs=[
                pl.BlockSpec((tm, E_pad), lambda i: (i, 0)),   # H row tile
                pl.BlockSpec((tm, F_pad), lambda i: (i, 0)),   # X row tile
            ],
            out_specs=pl.BlockSpec((E_pad, F_pad), lambda i: (0, 0)),
            scratch_shapes=[pltpu.VMEM((E_pad, F_pad), jnp.float32)]),
        compiler_params=pltpu.CompilerParams(
            dimension_semantics=("arbitrary",),
            vmem_limit_bytes=_VMEM_LIMIT),
        cost_estimate=pl.CostEstimate(
            flops=2 * N_pad * E_pad * F_pad,
            transcendentals=0,
            bytes_accessed=2 * (N_pad * E_pad + N_pad * F_pad
                                + E_pad * F_pad)),
    )(H, Xp)

    # ---- kernel B: Xv, residual, MLP (parallel over row tiles) -----------
    out_pad = pl.pallas_call(
        functools.partial(_node_mlp_kernel, alpha=float(alpha)),
        out_shape=jax.ShapeDtypeStruct((N_pad, F_pad), X.dtype),
        grid_spec=pltpu.PrefetchScalarGridSpec(
            num_scalar_prefetch=0,
            grid=(n_tiles,),
            in_specs=[
                pl.BlockSpec((1, 1), lambda i: (0, 0),
                             memory_space=pltpu.MemorySpace.SMEM),  # beta
                pl.BlockSpec((tm, E_pad), lambda i: (i, 0)),        # H tile
                pl.BlockSpec((E_pad, F_pad), lambda i: (0, 0)),     # Xe (res.)
                pl.BlockSpec((tm, F_pad), lambda i: (i, 0)),        # X0 tile
                pl.BlockSpec((F_pad, Fh_pad), lambda i: (0, 0)),    # W1
                pl.BlockSpec((1, Fh_pad), lambda i: (0, 0)),        # b1
                pl.BlockSpec((Fh_pad, F_pad), lambda i: (0, 0)),    # W2
                pl.BlockSpec((1, F_pad), lambda i: (0, 0)),         # b2
            ],
            out_specs=pl.BlockSpec((tm, F_pad), lambda i: (i, 0))),
        compiler_params=pltpu.CompilerParams(
            dimension_semantics=("parallel",),
            vmem_limit_bytes=_VMEM_LIMIT),
        cost_estimate=pl.CostEstimate(
            flops=2 * N_pad * (E_pad * F_pad + F_pad * Fh_pad
                               + Fh_pad * F_pad),
            transcendentals=0,
            bytes_accessed=2 * (N_pad * E_pad + E_pad * F_pad
                                + F_pad * Fh_pad + Fh_pad * F_pad)
                           + 4 * (2 * N_pad * F_pad)),
    )(beta_arr, H, xe, X0p, W1p, b1p, W2p, b2p)

    return out_pad[:N, :F]

# TODO(synk): for NNZ << N*E, replace the dense-H formulation with a
# scalar-prefetch (vertex/edges in SMEM) gather / segment-sum kernel.


def jumplink_reference(X, vertex, edges, X0, params, *, num_edges, alpha, beta):
    W1, b1, W2, b2 = params
    Xve = X[vertex]
    Xe = jax.ops.segment_sum(Xve, edges, num_segments=num_edges)
    Xev = Xe[edges]
    Xv = jax.ops.segment_sum(Xev, vertex, num_segments=X.shape[0])
    Xi = (1.0 - alpha) * Xv + alpha * X0
    mlp = jnp.maximum(Xi @ W1 + b1, 0.0) @ W2 + b2
    return (1.0 - beta) * Xi + beta * mlp


if __name__ == "__main__":
    # Small, deterministic shapes: N nodes, E hyperedges, NNZ incidences, F feats.
    N, E, NNZ, F = 16, 8, 48, 32       # in_features = out_features = 32
    alpha, beta = 0.5, 0.7

    key = jax.random.PRNGKey(0)
    kx, kx0, kv, ke, kw1, kb1, kw2, kb2 = jax.random.split(key, 8)

    X = jax.random.normal(kx, (N, F), jnp.float32)
    X0 = jax.random.normal(kx0, (N, F), jnp.float32)
    vertex = jax.random.randint(kv, (NNZ,), 0, N, jnp.int32)
    edges = jax.random.randint(ke, (NNZ,), 0, E, jnp.int32)

    # Deterministic MLP parameters (Linear(F, F) -> ReLU -> Linear(F, F)).
    W1 = jax.random.normal(kw1, (F, F), jnp.float32) * 0.1
    b1 = jax.random.normal(kb1, (1, F), jnp.float32) * 0.1
    W2 = jax.random.normal(kw2, (F, F), jnp.float32) * 0.1
    b2 = jax.random.normal(kb2, (1, F), jnp.float32) * 0.1
    params = (W1, b1, W2, b2)

    out = jumplink_conv(X, vertex, edges, X0, params,
                        num_edges=E, alpha=alpha, beta=beta)
    out = jax.block_until_ready(out)

    # Reference in f32 math with the same bf16 operand quantization the kernel
    # uses for its MXU feeds (X, W1, W2); X0 / biases / accumulation stay f32.
    q = lambda a: a.astype(jnp.bfloat16).astype(jnp.float32)
    ref = jumplink_reference(q(X), vertex, edges, X0, (q(W1), b1, q(W2), b2),
                             num_edges=E, alpha=alpha, beta=beta)

    assert out.shape == (N, F)
    assert jnp.allclose(out, ref, atol=5e-2, rtol=5e-2), "mismatch vs reference"

    print("KERNEL_OK")
</pallas_src>

<mosaic_0001>
module attributes {stable_mosaic.version = 11 : i64} {
  func.func @_edge_agg_kernel(%arg0: i32, %arg1: memref<16x128xbf16, #tpu.memory_space<vmem>>, %arg2: memref<16x128xbf16, #tpu.memory_space<vmem>>, %arg3: memref<128x128xbf16, #tpu.memory_space<vmem>>, %arg4: memref<128x128xf32, #tpu.memory_space<vmem>>) attributes {dimension_semantics = [#tpu.dimension_semantics<arbitrary>], iteration_bounds = array<i64: 1>, scalar_prefetch = 0 : i64, scratch_operands = 1 : i64, tpu.core_type = #tpu.core_type<tc>, window_params = [{transform_indices = @transform_0, window_bounds = array<i64: 16, 128>}, {transform_indices = @transform_1, window_bounds = array<i64: 16, 128>}, {pipeline_mode = #tpu.pipeline_mode<synchronous>, transform_indices = @transform_2, window_bounds = array<i64: 128, 128>}]} {
    %c0_i32 = arith.constant 0 : i32
    %0 = arith.cmpi eq, %arg0, %c0_i32 : i32
    %1 = arith.extui %0 : i1 to i32
    %c0_i32_0 = arith.constant 0 : i32
    %2 = arith.cmpi ne, %1, %c0_i32_0 : i32
    scf.if %2 {
      %cst_10 = arith.constant 0.000000e+00 : f32
      %12 = vector.broadcast %cst_10 : f32 to vector<128x128xf32>
      %c0_11 = arith.constant 0 : index
      %c0_12 = arith.constant 0 : index
      %13 = vector.load %arg4[%c0_11, %c0_12] : memref<128x128xf32, #tpu.memory_space<vmem>>, vector<128x128xf32>
      tpu.vector_store %arg4[%c0_11, %c0_12], %12 {strides = array<i32>} : memref<128x128xf32, #tpu.memory_space<vmem>>, vector<128x128xf32>,
    } else {
    }
    %c0 = arith.constant 0 : index
    %c0_1 = arith.constant 0 : index
    %3 = vector.load %arg4[%c0, %c0_1] : memref<128x128xf32, #tpu.memory_space<vmem>>, vector<128x128xf32>
    %c0_2 = arith.constant 0 : index
    %c0_3 = arith.constant 0 : index
    %4 = vector.load %arg1[%c0_2, %c0_3] : memref<16x128xbf16, #tpu.memory_space<vmem>>, vector<16x128xbf16>
    %c0_4 = arith.constant 0 : index
    %c0_5 = arith.constant 0 : index
    %5 = vector.load %arg2[%c0_4, %c0_5] : memref<16x128xbf16, #tpu.memory_space<vmem>>, vector<16x128xbf16>
    %cst = arith.constant dense<0.000000e+00> : vector<128x128xf32>
    %6 = tpu.matmul %4, %5, %cst {dimension_numbers = #tpu.dot_dimension_numbers<[0], [0], [1], [1], [0, 1, 1, 1], [], []>} : vector<16x128xbf16>, vector<16x128xbf16>, vector<128x128xf32> -> vector<128x128xf32>
    %7 = arith.addf %3, %6 : vector<128x128xf32>
    %c0_6 = arith.constant 0 : index
    %c0_7 = arith.constant 0 : index
    %8 = vector.load %arg4[%c0_6, %c0_7] : memref<128x128xf32, #tpu.memory_space<vmem>>, vector<128x128xf32>
    tpu.vector_store %arg4[%c0_6, %c0_7], %7 {strides = array<i32>} : memref<128x128xf32, #tpu.memory_space<vmem>>, vector<128x128xf32>,
    %c0_i32_8 = arith.constant 0 : i32
    %9 = arith.cmpi eq, %arg0, %c0_i32_8 : i32
    %10 = arith.extui %9 : i1 to i32
    %c0_i32_9 = arith.constant 0 : i32
    %11 = arith.cmpi ne, %10, %c0_i32_9 : i32
    scf.if %11 {
      %c0_10 = arith.constant 0 : index
      %c0_11 = arith.constant 0 : index
      %12 = vector.load %arg4[%c0_10, %c0_11] : memref<128x128xf32, #tpu.memory_space<vmem>>, vector<128x128xf32>
      %13 = arith.truncf %12 : vector<128x128xf32> to vector<128x128xbf16>
      %c0_12 = arith.constant 0 : index
      %c0_13 = arith.constant 0 : index
      %14 = vector.load %arg3[%c0_12, %c0_13] : memref<128x128xbf16, #tpu.memory_space<vmem>>, vector<128x128xbf16>
      tpu.vector_store %arg3[%c0_12, %c0_13], %13 {strides = array<i32>} : memref<128x128xbf16, #tpu.memory_space<vmem>>, vector<128x128xbf16>,
    } else {
    }
    return
  }
  func.func @transform_0(%arg0: i32) -> (i32, i32) {
    %c0_i32 = arith.constant 0 : i32
    %c0_i32_0 = arith.constant 0 : i32
    return %arg0, %c0_i32 : i32, i32
  }
  func.func @transform_1(%arg0: i32) -> (i32, i32) {
    %c0_i32 = arith.constant 0 : i32
    %c0_i32_0 = arith.constant 0 : i32
    return %arg0, %c0_i32 : i32, i32
  }
  func.func @transform_2(%arg0: i32) -> (i32, i32) {
    %c0_i32 = arith.constant 0 : i32
    %c0_i32_0 = arith.constant 0 : i32
    %c0_i32_1 = arith.constant 0 : i32
    return %c0_i32, %c0_i32_0 : i32, i32
  }
}

</mosaic_0001>

<llo_original>
// kernel: tpu_custom_call.1
$region0: #{tpu_custom_call.1}
  #allocation0 [shape = 'u32[]', space=smem, size = 0x4, offset = 0x4, fixed_abs, tag = 'smem constant byte address 0x4 - core index']
  #allocation1 [shape = 'u32[144,128]{1,0:T(1,128)}', space=vmem, size = 0x12000, scoped, tag = 'internal scratch']
  #allocation2 [shape = 'f32[128,128]{1,0:T(8,128)}', space=vmem, size = 0x10000, scoped, tag = 'scratch operand']
  %s0 = inlined_call_operand.hbm [shape: bf16[16,128], index: 0, kind: input, shape index: {}]
  %s1 = inlined_call_operand.hbm [shape: bf16[16,128], index: 1, kind: input, shape index: {}]
  %s2 = inlined_call_operand.hbm [shape: bf16[128,128], index: 2, kind: output, shape index: {}]
  %s3 = sld [smem:[#allocation0]]
  $region34: #{tpu_custom_call.1} parent=0
    _
  %s5 = ssub.s32 1, %s3
  %s6 = scalar_select 0, %s5, %s3
  $region1: #{tpu_custom_call.1} parent=0
    #allocation3 [shape = 'u8[4096]{0}', space=vmem, size = 0x1000, scoped, tag = 'input window, operand 0, single buffered']
    #allocation4 [shape = 's32[1]{0}', space=sflag, size = 0x4, scoped, tag = 'scoped memory for tpu_custom_call.1']
    #allocation5 [shape = 's32[1]{0}', space=sflag, size = 0x4, scoped, tag = 'scoped memory for tpu_custom_call.1']
    #allocation6 [shape = 'u8[4096]{0}', space=vmem, size = 0x1000, scoped, tag = 'input window, operand 1, single buffered']
    #allocation7 [shape = 's32[1]{0}', space=sflag, size = 0x4, scoped, tag = 'scoped memory for tpu_custom_call.1']
    #allocation8 [shape = 'u8[32768]{0}', space=vmem, size = 0x8000, scoped, tag = 'output window, operand 0, single buffered']
    %7 = vsyncpa [#allocation4], 0
    %8 = vsyncpa [#allocation7], 0
    %9 = vsyncpa [#allocation5], 0
    // Predicated region
    $region2: #{tpu_custom_call.1} parent=1 // pred_check
      _
    $region3: #{tpu_custom_call.1} parent=1 // pred_check_branch
      %11 = sbr.rel (0) target = $region5
    $region4: #{tpu_custom_call.1} parent=1 // pred_region
      %s13 = ssub.s32 128, 128
      %14 = vsyncadd [#allocation4], %s13
      %s15 = sshll.u32 [#allocation3], 4
      %s16 = int_to_ptr.vmem [resolvable:$true] %s15
      %21 = dma.hbm_to_vmem [thread:$0]  %s0, 128, %s16, [#allocation4], 64, 64, 4
    $region5: #{tpu_custom_call.1} parent=1 // pred_fallthru
      _
    // Predicated region
    $region6: #{tpu_custom_call.1} parent=1 // pred_check
      _
    $region7: #{tpu_custom_call.1} parent=1 // pred_check_branch
      %23 = sbr.rel (0) target = $region9
    $region8: #{tpu_custom_call.1} parent=1 // pred_region
      %s25 = ssub.s32 128, 128
      %26 = vsyncadd [#allocation7], %s25
      %s27 = sshll.u32 [#allocation6], 4
      %s28 = int_to_ptr.vmem [resolvable:$true] %s27
      %33 = dma.hbm_to_vmem [thread:$0]  %s1, 128, %s28, [#allocation7], 64, 64, 4
    $region9: #{tpu_custom_call.1} parent=1 // pred_fallthru
      _
    // Predicated region
    $region10: #{tpu_custom_call.1} parent=1 // pred_check
      _
    $region11: #{tpu_custom_call.1} parent=1 // pred_check_branch
      %35 = sbr.rel (0) target = $region13
    $region12: #{tpu_custom_call.1} parent=1 // pred_region
      %36 = dma.done [#allocation4], 128
    $region13: #{tpu_custom_call.1} parent=1 // pred_fallthru
      _
    // Predicated region
    $region14: #{tpu_custom_call.1} parent=1 // pred_check
      _
    $region15: #{tpu_custom_call.1} parent=1 // pred_check_branch
      %38 = sbr.rel (0) target = $region17
    $region16: #{tpu_custom_call.1} parent=1 // pred_region
      %39 = dma.done [#allocation7], 128
    $region17: #{tpu_custom_call.1} parent=1 // pred_fallthru
      _
    %p41 = scmp.eq.s32.totalorder 0, 0
    // Predicated region
    $region18: #{tpu_custom_call.1} parent=1 // pred_check
      %p42 = pneg %p41
    $region19: #{tpu_custom_call.1} parent=1 // pred_check_branch
      %44 = sbr.rel (%p42) target = $region21
    $region20: #{tpu_custom_call.1} parent=1 // pred_region
      %45 = vst [vmem:[#allocation2] sm:$0xff] 0.0
      %46 = vst [vmem:[#allocation2 + $0x8] sm:$0xff] 0.0
      %47 = vst [vmem:[#allocation2 + $0x10] sm:$0xff] 0.0
      %48 = vst [vmem:[#allocation2 + $0x18] sm:$0xff] 0.0
      %49 = vst [vmem:[#allocation2 + $0x20] sm:$0xff] 0.0
      %50 = vst [vmem:[#allocation2 + $0x28] sm:$0xff] 0.0
      %51 = vst [vmem:[#allocation2 + $0x30] sm:$0xff] 0.0
      %52 = vst [vmem:[#allocation2 + $0x38] sm:$0xff] 0.0
      %53 = vst [vmem:[#allocation2 + $0x40] sm:$0xff] 0.0
      %54 = vst [vmem:[#allocation2 + $0x48] sm:$0xff] 0.0
      %55 = vst [vmem:[#allocation2 + $0x50] sm:$0xff] 0.0
      %56 = vst [vmem:[#allocation2 + $0x58] sm:$0xff] 0.0
      %57 = vst [vmem:[#allocation2 + $0x60] sm:$0xff] 0.0
      %58 = vst [vmem:[#allocation2 + $0x68] sm:$0xff] 0.0
      %59 = vst [vmem:[#allocation2 + $0x70] sm:$0xff] 0.0
      %60 = vst [vmem:[#allocation2 + $0x78] sm:$0xff] 0.0
    $region21: #{tpu_custom_call.1} parent=1 // pred_fallthru
      _
    %v61 = vld [vmem:[#allocation2] sm:$0xff]
    %v62 = vld [vmem:[#allocation2 + $0x8] sm:$0xff]
    %v63 = vld [vmem:[#allocation2 + $0x10] sm:$0xff]
    %v64 = vld [vmem:[#allocation2 + $0x18] sm:$0xff]
    %v65 = vld [vmem:[#allocation2 + $0x20] sm:$0xff]
    %v66 = vld [vmem:[#allocation2 + $0x28] sm:$0xff]
    %v67 = vld [vmem:[#allocation2 + $0x30] sm:$0xff]
    %v68 = vld [vmem:[#allocation2 + $0x38] sm:$0xff]
    %v69 = vld [vmem:[#allocation2 + $0x40] sm:$0xff]
    %v70 = vld [vmem:[#allocation2 + $0x48] sm:$0xff]
    %v71 = vld [vmem:[#allocation2 + $0x50] sm:$0xff]
    %v72 = vld [vmem:[#allocation2 + $0x58] sm:$0xff]
    %v73 = vld [vmem:[#allocation2 + $0x60] sm:$0xff]
    %v74 = vld [vmem:[#allocation2 + $0x68] sm:$0xff]
    %v75 = vld [vmem:[#allocation2 + $0x70] sm:$0xff]
    %v76 = vld [vmem:[#allocation2 + $0x78] sm:$0xff]
    %v77 = vld [vmem:[#allocation3] sm:$0xf]
    %v78 = vld [vmem:[#allocation3 + $0x4] sm:$0xf]
    %v79 = vld [vmem:[#allocation6] sm:$0xf]
    %v80 = vld [vmem:[#allocation6 + $0x4] sm:$0xf]
    %v83 = vunpack.c.l.b16 %v77
    %v84 = vunpack.c.l.b16 %v78
    %v85 = vpack.c.b16 %v84, %v83
    %87 = vxpose.xlu0.c.b16.start [1/8] %v85, 128
    %88 = vxpose.xlu0.c.b16.cont [2/8] 0, 128
    %89 = vxpose.xlu0.c.b16.cont [3/8] 0, 128
    %90 = vxpose.xlu0.c.b16.cont [4/8] 0, 128
    %91 = vxpose.xlu0.c.b16.cont [5/8] 0, 128
    %92 = vxpose.xlu0.c.b16.cont [6/8] 0, 128
    %93 = vxpose.xlu0.c.b16.cont [7/8] 0, 128
    %94 = vxpose.xlu0.c.b16.end [8/8] 0, 128
    %v95 = vpop.trf.xlu0
    %v96 = vpop.trf.xlu0
    %v97 = vpop.trf.xlu0
    %v98 = vpop.trf.xlu0
    %v99 = vpop.trf.xlu0
    %v100 = vpop.trf.xlu0
    %v101 = vpop.trf.xlu0
    %v102 = vpop.trf.xlu0
    %v105 = vunpack.c.l.b16 %v79
    %v106 = vunpack.c.l.b16 %v80
    %v107 = vpack.c.b16 %v106, %v105
    %vm109 = vcmask 130048
    %v111 = vsel %vm109, %v95, 0
    %v114 = vsel %vm109, %v96, 0
    %v117 = vsel %vm109, %v97, 0
    %v120 = vsel %vm109, %v98, 0
    %v123 = vsel %vm109, %v99, 0
    %v126 = vsel %vm109, %v100, 0
    %v129 = vsel %vm109, %v101, 0
    %v132 = vsel %vm109, %v102, 0
    %134 = vmatprep.subr.bf16.mxu0 0
    %135 = vmatpush1.bf16.msra.mxu0 %v107
    %136 = vmatprep.subr.bf16.mxu0 0
    %137 = vmatpush1.bf16.msra.mxu0 0
    %138 = vmatprep.subr.bf16.mxu0 0
    %139 = vmatpush1.bf16.msra.mxu0 0
    %140 = vmatprep.subr.bf16.mxu0 0
    %141 = vmatpush1.bf16.msra.mxu0 0
    %142 = vmatprep.subr.bf16.mxu0 0
    %143 = vmatpush1.bf16.msra.mxu0 0
    %144 = vmatprep.subr.bf16.mxu0 0
    %145 = vmatpush1.bf16.msra.mxu0 0
    %146 = vmatprep.subr.bf16.mxu0 0
    %147 = vmatpush1.bf16.msra.mxu0 0
    %148 = vmatprep.subr.bf16.mxu0 0
    %149 = vmatpush1.bf16.msra.mxu0 0
    %150 = vmatprep.subr.bf16.mxu0 0
    %151 = vmatpush1.bf16.msra.mxu0 0
    %152 = vmatprep.subr.bf16.mxu0 0
    %153 = vmatpush1.bf16.msra.mxu0 0
    %154 = vmatprep.subr.bf16.mxu0 0
    %155 = vmatpush1.bf16.msra.mxu0 0
    %156 = vmatprep.subr.bf16.mxu0 0
    %157 = vmatpush1.bf16.msra.mxu0 0
    %158 = vmatprep.subr.bf16.mxu0 0
    %159 = vmatpush1.bf16.msra.mxu0 0
    %160 = vmatprep.subr.bf16.mxu0 0
    %161 = vmatpush1.bf16.msra.mxu0 0
    %162 = vmatprep.subr.bf16.mxu0 0
    %163 = vmatpush1.bf16.msra.mxu0 0
    %164 = vmatprep.subr.bf16.mxu0 0
    %165 = vmatpush1.bf16.msra.mxu0 0
    %166 = vmatprep.mubr.bf16.mxu0 0
    %167 = vmatmul.mubr.bf16.gmra.mrb[0].mxu0 %v111
    %v168 = vpop.f32.mrb[0].mxu0
    %v169 = vadd.f32 0.0, %v168
    %v170 = vpop.f32.mrb[0].mxu0
    %v171 = vpop.f32.mrb[0].mxu0
    %v172 = vadd.f32 0.0, %v171
    %v173 = vpop.f32.mrb[0].mxu0
    %174 = vmatprep.mubr.bf16.mxu0 0
    %175 = vmatmul.mubr.bf16.gmra.mrb[0].mxu0 %v114
    %v176 = vpop.f32.mrb[0].mxu0
    %v177 = vadd.f32 0.0, %v176
    %v178 = vpop.f32.mrb[0].mxu0
    %v179 = vpop.f32.mrb[0].mxu0
    %v180 = vadd.f32 0.0, %v179
    %v181 = vpop.f32.mrb[0].mxu0
    %182 = vmatprep.mubr.bf16.mxu0 0
    %183 = vmatmul.mubr.bf16.gmra.mrb[0].mxu0 %v117
    %v184 = vpop.f32.mrb[0].mxu0
    %v185 = vadd.f32 0.0, %v184
    %v186 = vpop.f32.mrb[0].mxu0
    %v187 = vpop.f32.mrb[0].mxu0
    %v188 = vadd.f32 0.0, %v187
    %v189 = vpop.f32.mrb[0].mxu0
    %190 = vmatprep.mubr.bf16.mxu0 0
    %191 = vmatmul.mubr.bf16.gmra.mrb[0].mxu0 %v120
    %v192 = vpop.f32.mrb[0].mxu0
    %v193 = vadd.f32 0.0, %v192
    %v194 = vpop.f32.mrb[0].mxu0
    %v195 = vpop.f32.mrb[0].mxu0
    %v196 = vadd.f32 0.0, %v195
    %v197 = vpop.f32.mrb[0].mxu0
    %198 = vmatprep.mubr.bf16.mxu0 0
    %199 = vmatmul.mubr.bf16.gmra.mrb[0].mxu0 %v123
    %v200 = vpop.f32.mrb[0].mxu0
    %v201 = vadd.f32 0.0, %v200
    %v202 = vpop.f32.mrb[0].mxu0
    %v203 = vpop.f32.mrb[0].mxu0
    %v204 = vadd.f32 0.0, %v203
    %v205 = vpop.f32.mrb[0].mxu0
    %206 = vmatprep.mubr.bf16.mxu0 0
    %207 = vmatmul.mubr.bf16.gmra.mrb[0].mxu0 %v126
    %v208 = vpop.f32.mrb[0].mxu0
    %v209 = vadd.f32 0.0, %v208
    %v210 = vpop.f32.mrb[0].mxu0
    %v211 = vpop.f32.mrb[0].mxu0
    %v212 = vadd.f32 0.0, %v211
    %v213 = vpop.f32.mrb[0].mxu0
    %214 = vmatprep.mubr.bf16.mxu0 0
    %215 = vmatmul.mubr.bf16.gmra.mrb[0].mxu0 %v129
    %v216 = vpop.f32.mrb[0].mxu0
    %v217 = vadd.f32 0.0, %v216
    %v218 = vpop.f32.mrb[0].mxu0
    %v219 = vpop.f32.mrb[0].mxu0
    %v220 = vadd.f32 0.0, %v219
    %v221 = vpop.f32.mrb[0].mxu0
    %222 = vmatprep.mubr.bf16.mxu0 0
    %223 = vmatmul.mubr.bf16.gmra.mrb[0].mxu0 %v132
    %v224 = vpop.f32.mrb[0].mxu0
    %v225 = vadd.f32 0.0, %v224
    %v226 = vpop.f32.mrb[0].mxu0
    %v227 = vpop.f32.mrb[0].mxu0
    %v228 = vadd.f32 0.0, %v227
    %v229 = vpop.f32.mrb[0].mxu0
    %230 = vdwg.mxu0
    %v231 = vadd.f32 %v61, %v169
    %v232 = vadd.f32 %v62, %v172
    %v233 = vadd.f32 %v63, %v177
    %v234 = vadd.f32 %v64, %v180
    %v235 = vadd.f32 %v65, %v185
    %v236 = vadd.f32 %v66, %v188
    %v237 = vadd.f32 %v67, %v193
    %v238 = vadd.f32 %v68, %v196
    %v239 = vadd.f32 %v69, %v201
    %v240 = vadd.f32 %v70, %v204
    %v241 = vadd.f32 %v71, %v209
    %v242 = vadd.f32 %v72, %v212
    %v243 = vadd.f32 %v73, %v217
    %v244 = vadd.f32 %v74, %v220
    %v245 = vadd.f32 %v75, %v225
    %v246 = vadd.f32 %v76, %v228
    %247 = vst [vmem:[#allocation2] sm:$0xff] %v231
    %248 = vst [vmem:[#allocation2 + $0x8] sm:$0xff] %v232
    %249 = vst [vmem:[#allocation2 + $0x10] sm:$0xff] %v233
    %250 = vst [vmem:[#allocation2 + $0x18] sm:$0xff] %v234
    %251 = vst [vmem:[#allocation2 + $0x20] sm:$0xff] %v235
    %252 = vst [vmem:[#allocation2 + $0x28] sm:$0xff] %v236
    %253 = vst [vmem:[#allocation2 + $0x30] sm:$0xff] %v237
    %254 = vst [vmem:[#allocation2 + $0x38] sm:$0xff] %v238
    %255 = vst [vmem:[#allocation2 + $0x40] sm:$0xff] %v239
    %256 = vst [vmem:[#allocation2 + $0x48] sm:$0xff] %v240
    %257 = vst [vmem:[#allocation2 + $0x50] sm:$0xff] %v241
    %258 = vst [vmem:[#allocation2 + $0x58] sm:$0xff] %v242
    %259 = vst [vmem:[#allocation2 + $0x60] sm:$0xff] %v243
    %260 = vst [vmem:[#allocation2 + $0x68] sm:$0xff] %v244
    %261 = vst [vmem:[#allocation2 + $0x70] sm:$0xff] %v245
    %262 = vst [vmem:[#allocation2 + $0x78] sm:$0xff] %v246
    // Predicated region
    $region22: #{tpu_custom_call.1} parent=1 // pred_check
      %p263 = pneg %p41
    $region23: #{tpu_custom_call.1} parent=1 // pred_check_branch
      %265 = sbr.rel (%p263) target = $region25
    $region24: #{tpu_custom_call.1} parent=1 // pred_region
      %v266 = vld [vmem:[#allocation2] sm:$0xff]
      %v267 = vld [vmem:[#allocation2 + $0x8] sm:$0xff]
      %v268 = vld [vmem:[#allocation2 + $0x10] sm:$0xff]
      %v269 = vld [vmem:[#allocation2 + $0x18] sm:$0xff]
      %v270 = vld [vmem:[#allocation2 + $0x20] sm:$0xff]
      %v271 = vld [vmem:[#allocation2 + $0x28] sm:$0xff]
      %v272 = vld [vmem:[#allocation2 + $0x30] sm:$0xff]
      %v273 = vld [vmem:[#allocation2 + $0x38] sm:$0xff]
      %v274 = vld [vmem:[#allocation2 + $0x40] sm:$0xff]
      %v275 = vld [vmem:[#allocation2 + $0x48] sm:$0xff]
      %v276 = vld [vmem:[#allocation2 + $0x50] sm:$0xff]
      %v277 = vld [vmem:[#allocation2 + $0x58] sm:$0xff]
      %v278 = vld [vmem:[#allocation2 + $0x60] sm:$0xff]
      %v279 = vld [vmem:[#allocation2 + $0x68] sm:$0xff]
      %v280 = vld [vmem:[#allocation2 + $0x70] sm:$0xff]
      %v281 = vld [vmem:[#allocation2 + $0x78] sm:$0xff]
      %v282 = vpack.c.bf16 %v267, %v266
      %v283 = vpack.c.bf16 %v269, %v268
      %v284 = vpack.c.bf16 %v271, %v270
      %v285 = vpack.c.bf16 %v273, %v272
      %v286 = vpack.c.bf16 %v275, %v274
      %v287 = vpack.c.bf16 %v277, %v276
      %v288 = vpack.c.bf16 %v279, %v278
      %v289 = vpack.c.bf16 %v281, %v280
      %v298 = vunpack.c.l.b16 %v282
      %v299 = vunpack.c.h.b16 %v282
      %v300 = vunpack.c.l.b16 %v283
      %v301 = vunpack.c.h.b16 %v283
      %v302 = vunpack.c.l.b16 %v284
      %v303 = vunpack.c.h.b16 %v284
      %v304 = vunpack.c.l.b16 %v285
      %v305 = vunpack.c.h.b16 %v285
      %v306 = vunpack.c.l.b16 %v286
      %v307 = vunpack.c.h.b16 %v286
      %v308 = vunpack.c.l.b16 %v287
      %v309 = vunpack.c.h.b16 %v287
      %v310 = vunpack.c.l.b16 %v288
      %v311 = vunpack.c.h.b16 %v288
      %v312 = vunpack.c.l.b16 %v289
      %v313 = vunpack.c.h.b16 %v289
      %v314 = vpack.c.b16 %v298, %v298
      %v315 = vpack.c.b16 %v299, %v299
      %v316 = vpack.c.b16 %v300, %v300
      %v317 = vpack.c.b16 %v301, %v301
      %v318 = vpack.c.b16 %v302, %v302
      %v319 = vpack.c.b16 %v303, %v303
      %v320 = vpack.c.b16 %v304, %v304
      %v321 = vpack.c.b16 %v305, %v305
      %v322 = vpack.c.b16 %v306, %v306
      %v323 = vpack.c.b16 %v307, %v307
      %v324 = vpack.c.b16 %v308, %v308
      %v325 = vpack.c.b16 %v309, %v309
      %v326 = vpack.c.b16 %v310, %v310
      %v327 = vpack.c.b16 %v311, %v311
      %v328 = vpack.c.b16 %v312, %v312
      %v329 = vpack.c.b16 %v313, %v313
      %346 = vst [vmem:[#allocation8] sm:$0xf] %v314
      %347 = vst [vmem:[#allocation8 + $0x4] sm:$0xf] %v315
      %348 = vst [vmem:[#allocation8 + $0x8] sm:$0xf] %v316
      %349 = vst [vmem:[#allocation8 + $0xc] sm:$0xf] %v317
      %350 = vst [vmem:[#allocation8 + $0x10] sm:$0xf] %v318
      %351 = vst [vmem:[#allocation8 + $0x14] sm:$0xf] %v319
      %352 = vst [vmem:[#allocation8 + $0x18] sm:$0xf] %v320
      %353 = vst [vmem:[#allocation8 + $0x1c] sm:$0xf] %v321
      %354 = vst [vmem:[#allocation8 + $0x20] sm:$0xf] %v322
      %355 = vst [vmem:[#allocation8 + $0x24] sm:$0xf] %v323
      %356 = vst [vmem:[#allocation8 + $0x28] sm:$0xf] %v324
      %357 = vst [vmem:[#allocation8 + $0x2c] sm:$0xf] %v325
      %358 = vst [vmem:[#allocation8 + $0x30] sm:$0xf] %v326
      %359 = vst [vmem:[#allocation8 + $0x34] sm:$0xf] %v327
      %360 = vst [vmem:[#allocation8 + $0x38] sm:$0xf] %v328
      %361 = vst [vmem:[#allocation8 + $0x3c] sm:$0xf] %v329
    $region25: #{tpu_custom_call.1} parent=1 // pred_fallthru
      _
    // Predicated region
    $region26: #{tpu_custom_call.1} parent=1 // pred_check
      _
    $region27: #{tpu_custom_call.1} parent=1 // pred_check_branch
      %363 = sbr.rel (0) target = $region29
    $region28: #{tpu_custom_call.1} parent=1 // pred_region
      %s365 = ssub.s32 1024, 1024
      %366 = vsyncadd [#allocation5], %s365
      %s367 = sshll.u32 [#allocation8], 4
      %s368 = int_to_ptr.vmem [resolvable:$true] %s367
      %373 = dma.vmem_to_hbm [thread:$0]  %s368, 1024, %s2, [#allocation5], 64, 64, 4
    $region29: #{tpu_custom_call.1} parent=1 // pred_fallthru
      _
    // Predicated region
    $region30: #{tpu_custom_call.1} parent=1 // pred_check
      _
    $region31: #{tpu_custom_call.1} parent=1 // pred_check_branch
      %375 = sbr.rel (0) target = $region33
    $region32: #{tpu_custom_call.1} parent=1 // pred_region
      %376 = dma.done [#allocation5], 1024
    $region33: #{tpu_custom_call.1} parent=1 // pred_fallthru
      _
    %377 = vsyncpa [#allocation4], 1
    %378 = vsyncpa [#allocation7], 1
    %379 = vsyncpa [#allocation5], 1

</llo_original>
